<compile_context>
chip_gen: v7x
topology: tpu7x:2x2x1
jax: 0.10.0
libtpu: 0.0.40
codegen_flags: <defaults>
</compile_context>

<pallas_src>
import functools

import numpy as np
import jax
import jax.numpy as jnp
from jax.experimental import pallas as pl
from jax.experimental.pallas import tpu as pltpu

TI = 256  # elements per row block == chunk width of the inner j-loop


def _dup_kernel(x_col_ref, x_all_ref, out_ref, *, n_valid, ti):
    """out[r] = 1 iff element (i*TI + r) has an equal element at a smaller index."""
    i = pl.program_id(0)
    xi = x_col_ref[...]                                    # (TI, 1) block values

    # --- chunks strictly before this block: every column is "earlier", no mask.
    def body(jj, ind):
        chunk = x_all_ref[jj]                              # (1, TI) earlier chunk
        hit = jnp.any(xi == chunk, axis=1, keepdims=True)  # (TI, 1) bool
        return ind | hit.astype(jnp.int32)

    ind = jax.lax.fori_loop(0, i, body, jnp.zeros((ti, 1), jnp.int32))

    # --- diagonal chunk: only columns strictly before each row within the block.
    diag = x_all_ref[i]                                    # (1, TI) same values as xi
    lr = jax.lax.broadcasted_iota(jnp.int32, (ti, 1), 0)   # local row index
    lc = jax.lax.broadcasted_iota(jnp.int32, (1, ti), 1)   # local col index
    tri = lc < lr                                          # (TI, TI) strict lower tri
    diag_hit = jnp.any((xi == diag) & tri, axis=1, keepdims=True)
    ind = ind | diag_hit.astype(jnp.int32)

    # --- drop padded rows (global index >= n_valid); padded columns are only
    #     ever reachable from padded rows, so no column mask is needed.
    row_valid = (i * ti + lr) < n_valid                    # (TI, 1) bool
    out_ref[...] = jnp.where(row_valid, ind, 0)


def custom_loss(prediction):
    """Pallas implementation of CustomLoss.forward(prediction) -> scalar f32."""
    x = prediction.reshape(-1).astype(jnp.float32)
    n = x.shape[0]
    npad = ((n + TI - 1) // TI) * TI
    num_blocks = npad // TI
    xp = jnp.pad(x, (0, npad - n))                 # pad value never counted (masked)

    x_col = xp.reshape(npad, 1)                    # column view, tiled over the grid
    x_all = xp.reshape(num_blocks, 1, TI)          # chunked row view, resident in VMEM

    kernel = functools.partial(_dup_kernel, n_valid=n, ti=TI)

    ind = pl.pallas_call(
        kernel,
        out_shape=jax.ShapeDtypeStruct((npad, 1), jnp.int32),
        grid_spec=pltpu.PrefetchScalarGridSpec(
            num_scalar_prefetch=0,
            grid=(num_blocks,),
            in_specs=[
                pl.BlockSpec((TI, 1), lambda i: (i, 0)),                  # block column
                pl.BlockSpec((num_blocks, 1, TI), lambda i: (0, 0, 0)),   # full data, resident
            ],
            out_specs=pl.BlockSpec((TI, 1), lambda i: (i, 0)),            # per-block indicators
        ),
        compiler_params=pltpu.CompilerParams(
            dimension_semantics=("parallel",)),
    )(x_col, x_all)

    # Scalar reductions happen outside the kernel (trivial, mem-bound XLA reduces).
    num_duplicates = jnp.sum(ind).astype(jnp.float32)     # int32 count -> exact
    s = jnp.sum(x)                                        # cancels, kept for parity
    # Mirror the PyTorch expression exactly: loss + sum - sum
    return (num_duplicates + s) - s


if __name__ == "__main__":
    key = jax.random.PRNGKey(0)
    # Quantize normals so the input actually contains duplicates.
    prediction = jnp.round(
        jax.random.normal(key, (2, 4, 16, 16), dtype=jnp.float32) * 2.0)

    out = custom_loss(prediction)
    out = jax.block_until_ready(out)

    # Reference (same semantics as the PyTorch module).
    x_np = np.asarray(prediction)
    ref = x_np.size - np.unique(x_np).size
    assert np.isclose(float(out), float(ref), atol=1e-2), (float(out), ref)
    print("KERNEL_OK")
</pallas_src>

<mosaic_0001>
module attributes {stable_mosaic.version = 11 : i64} {
  func.func @_dup_kernel(%arg0: i32, %arg1: memref<256x1xf32, #tpu.memory_space<vmem>>, %arg2: memref<8x1x256xf32, #tpu.memory_space<vmem>>, %arg3: memref<256x1xi32, #tpu.memory_space<vmem>>) attributes {dimension_semantics = [#tpu.dimension_semantics<parallel>], iteration_bounds = array<i64: 8>, scalar_prefetch = 0 : i64, scratch_operands = 0 : i64, tpu.core_type = #tpu.core_type<tc>, window_params = [{transform_indices = @transform_0, window_bounds = array<i64: 256, 1>}, {pipeline_mode = #tpu.pipeline_mode<synchronous>, transform_indices = @transform_1, window_bounds = array<i64: 8, 1, 256>}, {transform_indices = @transform_2, window_bounds = array<i64: 256, 1>}]} {
    %c0 = arith.constant 0 : index
    %c0_0 = arith.constant 0 : index
    %0 = vector.load %arg1[%c0, %c0_0] : memref<256x1xf32, #tpu.memory_space<vmem>>, vector<256x1xf32>
    %c0_i32 = arith.constant 0 : i32
    %1 = vector.broadcast %c0_i32 : i32 to vector<256x1xi32>
    %c0_i32_1 = arith.constant 0 : i32
    %2 = arith.subi %arg0, %c0_i32_1 : i32
    %3 = arith.addi %c0_i32_1, %2 : i32
    %c1_i32 = arith.constant 1 : i32
    %4 = scf.for %arg4 = %c0_i32_1 to %3 step %c1_i32 iter_args(%arg5 = %1) -> (vector<256x1xi32>)  : i32 {
      %34 = arith.index_cast %arg4 : i32 to index
      %c0_10 = arith.constant 0 : index
      %c0_11 = arith.constant 0 : index
      %35 = vector.load %arg2[%34, %c0_10, %c0_11] : memref<8x1x256xf32, #tpu.memory_space<vmem>>, vector<1x1x256xf32>
      %36 = vector.shape_cast %35 : vector<1x1x256xf32> to vector<1x256xf32>
      %37 = vector.broadcast %0 : vector<256x1xf32> to vector<256x256xf32>
      %38 = vector.broadcast %36 : vector<1x256xf32> to vector<256x256xf32>
      %39 = arith.cmpf oeq, %37, %38 : vector<256x256xf32>
      %cst_12 = arith.constant 1.000000e+00 : f32
      %cst_13 = arith.constant 0.000000e+00 : f32
      %40 = vector.broadcast %cst_12 : f32 to vector<256x256xf32>
      %41 = vector.broadcast %cst_13 : f32 to vector<256x256xf32>
      %42 = arith.select %39, %40, %41 : vector<256x256xi1>, vector<256x256xf32>
      %cst_14 = arith.constant dense<0xFF800000> : vector<256xf32>
      %43 = vector.multi_reduction <maximumf>, %42, %cst_14 [1] : vector<256x256xf32> to vector<256xf32>
      %cst_15 = arith.constant 0.000000e+00 : f32
      %44 = vector.broadcast %cst_15 : f32 to vector<256xf32>
      %45 = arith.cmpf ogt, %43, %44 : vector<256xf32>
      %46 = vector.shape_cast %45 : vector<256xi1> to vector<256x1xi1>
      %47 = arith.extui %46 : vector<256x1xi1> to vector<256x1xi32>
      %48 = arith.ori %arg5, %47 : vector<256x1xi32>
      scf.yield %48 : vector<256x1xi32>
    }
    %5 = arith.index_cast %arg0 : i32 to index
    %c0_2 = arith.constant 0 : index
    %c0_3 = arith.constant 0 : index
    %6 = vector.load %arg2[%5, %c0_2, %c0_3] : memref<8x1x256xf32, #tpu.memory_space<vmem>>, vector<1x1x256xf32>
    %7 = vector.shape_cast %6 : vector<1x1x256xf32> to vector<1x256xf32>
    %8 = tpu.iota {dimensions = array<i32: 0>} : vector<256x1xi32>
    %9 = tpu.iota {dimensions = array<i32: 1>} : vector<1x256xi32>
    %10 = vector.broadcast %9 : vector<1x256xi32> to vector<256x256xi32>
    %11 = vector.broadcast %8 : vector<256x1xi32> to vector<256x256xi32>
    %12 = arith.cmpi slt, %10, %11 : vector<256x256xi32>
    %13 = vector.broadcast %0 : vector<256x1xf32> to vector<256x256xf32>
    %14 = vector.broadcast %7 : vector<1x256xf32> to vector<256x256xf32>
    %15 = arith.cmpf oeq, %13, %14 : vector<256x256xf32>
    %16 = arith.andi %15, %12 : vector<256x256xi1>
    %cst = arith.constant 1.000000e+00 : f32
    %cst_4 = arith.constant 0.000000e+00 : f32
    %17 = vector.broadcast %cst : f32 to vector<256x256xf32>
    %18 = vector.broadcast %cst_4 : f32 to vector<256x256xf32>
    %19 = arith.select %16, %17, %18 : vector<256x256xi1>, vector<256x256xf32>
    %cst_5 = arith.constant dense<0xFF800000> : vector<256xf32>
    %20 = vector.multi_reduction <maximumf>, %19, %cst_5 [1] : vector<256x256xf32> to vector<256xf32>
    %cst_6 = arith.constant 0.000000e+00 : f32
    %21 = vector.broadcast %cst_6 : f32 to vector<256xf32>
    %22 = arith.cmpf ogt, %20, %21 : vector<256xf32>
    %23 = vector.shape_cast %22 : vector<256xi1> to vector<256x1xi1>
    %24 = arith.extui %23 : vector<256x1xi1> to vector<256x1xi32>
    %25 = arith.ori %4, %24 : vector<256x1xi32>
    %c256_i32 = arith.constant 256 : i32
    %26 = arith.muli %arg0, %c256_i32 : i32
    %27 = vector.broadcast %26 : i32 to vector<256x1xi32>
    %28 = arith.addi %27, %8 : vector<256x1xi32>
    %c2048_i32 = arith.constant 2048 : i32
    %29 = vector.broadcast %c2048_i32 : i32 to vector<256x1xi32>
    %30 = arith.cmpi slt, %28, %29 : vector<256x1xi32>
    %c0_i32_7 = arith.constant 0 : i32
    %31 = vector.broadcast %c0_i32_7 : i32 to vector<256x1xi32>
    %32 = arith.select %30, %25, %31 : vector<256x1xi1>, vector<256x1xi32>
    %c0_8 = arith.constant 0 : index
    %c0_9 = arith.constant 0 : index
    %33 = vector.load %arg3[%c0_8, %c0_9] : memref<256x1xi32, #tpu.memory_space<vmem>>, vector<256x1xi32>
    tpu.vector_store %arg3[%c0_8, %c0_9], %32 {strides = array<i32>} : memref<256x1xi32, #tpu.memory_space<vmem>>, vector<256x1xi32>,
    return
  }
  func.func @transform_0(%arg0: i32) -> (i32, i32) {
    %c0_i32 = arith.constant 0 : i32
    %c0_i32_0 = arith.constant 0 : i32
    return %arg0, %c0_i32 : i32, i32
  }
  func.func @transform_1(%arg0: i32) -> (i32, i32, i32) {
    %c0_i32 = arith.constant 0 : i32
    %c0_i32_0 = arith.constant 0 : i32
    %c0_i32_1 = arith.constant 0 : i32
    %c0_i32_2 = arith.constant 0 : i32
    return %c0_i32, %c0_i32_0, %c0_i32_1 : i32, i32, i32
  }
  func.func @transform_2(%arg0: i32) -> (i32, i32) {
    %c0_i32 = arith.constant 0 : i32
    %c0_i32_0 = arith.constant 0 : i32
    return %arg0, %c0_i32 : i32, i32
  }
}

</mosaic_0001>

<llo_original>
// kernel: tpu_custom_call.1
$region0: #{tpu_custom_call.1}
  #allocation0 [shape = 'u32[]', space=smem, size = 0x4, offset = 0x4, fixed_abs, tag = 'smem constant byte address 0x4 - core index']
  #allocation1 [shape = 'u32[144,128]{1,0:T(1,128)}', space=vmem, size = 0x12000, scoped, tag = 'internal scratch']
  %s0 = inlined_call_operand.vmem [shape: f32[2048,1], index: 0, kind: input, shape index: {}]
  %s1 = inlined_call_operand.vmem [shape: f32[8,1,256], index: 1, kind: input, shape index: {}]
  %s2 = inlined_call_operand.vmem [shape: s32[2048,1], index: 2, kind: output, shape index: {}]
  %s3 = sld [smem:[#allocation0]]
  $region48: #{tpu_custom_call.1} parent=0
    _
  %s5 = ssub.s32 1, %s3
  %s6 = scalar_select 0, %s5, %s3
  loop: start=0, step=1, limit=10
  $region2: #{tpu_custom_call.1} parent=0 // loop_pre_header
    _
  $region3: #{tpu_custom_call.1} parent=0 // loop_header
    %s8 = sphi 0, %s12
    %p9 = scmp.ge.s32.totalorder %s8, 10
    %s18 = sphi 0, %s20
    %s21 = sphi 0, %s18
    %s22 = sphi 0, %s21
    %s38 = sphi 0, %s22
    %s42 = sphi 0, %s42
    %s44 = sphi 0, %s42
    %s45 = sphi 0, %s44
    %s59 = sphi 0, %s45
    %s65 = sphi 0, %s67
    %s68 = sphi 0, %s65
    %s69 = sphi 0, %s68
    %s85 = sphi 0, %s69
  $region4: #{tpu_custom_call.1} parent=0 // loop_header_branch
    %11 = sbr.rel (%p9) target = $region8
  $region5: #{tpu_custom_call.1} parent=0 // loop_body
    %s13 = ssub.s32 %s8, 1
    %s14 = ssub.s32 %s8, 2
    %s15 = sadd.s32 %s8, 1
    %s16 = ssub.s32 %s8, %s15
    %p17 = scmp.eq.s32.totalorder %s16, 0
    %s19 = sadd.s32 %s18, 1
    %s20 = scalar_select %p17, %s18, %s19
    %p23 = pneg %p17
    %p24 = scmp.eq.s32.totalorder %s8, 7
    %p25 = por %p23, %p24
    %p26 = scmp.ne.s32.totalorder %s18, %s21
    %p27 = scmp.eq.s32.totalorder %s8, 0
    %p28 = por %p26, %p27
    %p29 = scmp.ne.s32.totalorder %s18, %s21
    %p30 = scmp.eq.s32.totalorder %s13, 7
    %p31 = por %p29, %p30
    %p32 = scmp.ne.s32.totalorder %s21, %s22
    %p33 = scmp.eq.s32.totalorder %s13, 0
    %p34 = por %p32, %p33
    %p35 = scmp.ne.s32.totalorder %s21, %s22
    %p36 = scmp.eq.s32.totalorder %s14, 7
    %p37 = por %p35, %p36
    %p39 = scmp.ne.s32.totalorder %s22, %s38
    %p40 = scmp.eq.s32.totalorder %s14, 0
    %p41 = por %p39, %p40
    %s43 = sadd.s32 %s42, 1
    %p46 = scmp.eq.s32.totalorder %s8, 7
    %p47 = scmp.ne.s32.totalorder %s42, %s44
    %p48 = scmp.eq.s32.totalorder %s8, 0
    %p49 = por %p47, %p48
    %p50 = scmp.ne.s32.totalorder %s42, %s44
    %p51 = scmp.eq.s32.totalorder %s13, 7
    %p52 = por %p50, %p51
    %p53 = scmp.ne.s32.totalorder %s44, %s45
    %p54 = scmp.eq.s32.totalorder %s13, 0
    %p55 = por %p53, %p54
    %p56 = scmp.ne.s32.totalorder %s44, %s45
    %p57 = scmp.eq.s32.totalorder %s14, 7
    %p58 = por %p56, %p57
    %p60 = scmp.ne.s32.totalorder %s45, %s59
    %p61 = scmp.eq.s32.totalorder %s14, 0
    %p62 = por %p60, %p61
    %s63 = ssub.s32 %s8, %s15
    %p64 = scmp.eq.s32.totalorder %s63, 0
    %s66 = sadd.s32 %s65, 1
    %s67 = scalar_select %p64, %s65, %s66
    %p70 = pneg %p64
    %p71 = scmp.eq.s32.totalorder %s8, 7
    %p72 = por %p70, %p71
    %p73 = scmp.ne.s32.totalorder %s65, %s68
    %p74 = scmp.eq.s32.totalorder %s8, 0
    %p75 = por %p73, %p74
    %p76 = scmp.ne.s32.totalorder %s65, %s68
    %p77 = scmp.eq.s32.totalorder %s13, 7
    %p78 = por %p76, %p77
    %p79 = scmp.ne.s32.totalorder %s68, %s69
    %p80 = scmp.eq.s32.totalorder %s13, 0
    %p81 = por %p79, %p80
    %p82 = scmp.ne.s32.totalorder %s68, %s69
    %p83 = scmp.eq.s32.totalorder %s14, 7
    %p84 = por %p82, %p83
    %p86 = scmp.ne.s32.totalorder %s69, %s85
    %p87 = scmp.eq.s32.totalorder %s14, 0
    %p88 = por %p86, %p87
    %p89 = scmp.le.s32.totalorder 1, %s8
    %p90 = scmp.lt.s32.totalorder %s8, 9
    %p91 = pnand %p89, %p90
    %p92 = pneg %p91
    // Predicated region
    $region9: #{tpu_custom_call.1} parent=5 // pred_check
      _
    $region10: #{tpu_custom_call.1} parent=5 // pred_check_branch
      %94 = sbr.rel (%p91) target = $region12
    $region11: #{tpu_custom_call.1} parent=5 // pred_region
      %s95 = ssub.s32 %s8, 1
      // Predicated region
      $region13: #{tpu_custom_call.1} parent=11 // pred_check
        %p96 = pneg %p55
      $region14: #{tpu_custom_call.1} parent=11 // pred_check_branch
        %98 = sbr.rel (%p96) target = $region16
      $region15: #{tpu_custom_call.1} parent=11 // pred_region
        _
      $region16: #{tpu_custom_call.1} parent=11 // pred_fallthru
        _
    $region12: #{tpu_custom_call.1} parent=5 // pred_fallthru
      _
    %p99 = scmp.lt.s32.totalorder %s8, 8
    // Predicated region
    $region17: #{tpu_custom_call.1} parent=5 // pred_check
      %p100 = pneg %p99
    $region18: #{tpu_custom_call.1} parent=5 // pred_check_branch
      %102 = sbr.rel (%p100) target = $region20
    $region19: #{tpu_custom_call.1} parent=5 // pred_region
      // Predicated region
      $region21: #{tpu_custom_call.1} parent=19 // pred_check
        %p103 = pneg %p28
      $region22: #{tpu_custom_call.1} parent=19 // pred_check_branch
        %105 = sbr.rel (%p103) target = $region24
      $region23: #{tpu_custom_call.1} parent=19 // pred_region
        %s106 = smul.u32 32, %s8
        %p107 = scmp.lt.s32.totalorder %s106, 255
        %s108 = scalar_select %p107, %s106, 255
        %s109 = smul.addr %s108, 8
        %s110 = scalar_lea.vmem %s0, %s109
        %s111 = smul.u32 32, %s8
      $region24: #{tpu_custom_call.1} parent=19 // pred_fallthru
        _
    $region20: #{tpu_custom_call.1} parent=5 // pred_fallthru
      _
    %p112 = scmp.le.s32.totalorder 1, %s8
    %p113 = scmp.lt.s32.totalorder %s8, 9
    %p114 = pnand %p112, %p113
    %p115 = pneg %p114
    // Predicated region
    $region25: #{tpu_custom_call.1} parent=5 // pred_check
      _
    $region26: #{tpu_custom_call.1} parent=5 // pred_check_branch
      %117 = sbr.rel (%p114) target = $region28
    $region27: #{tpu_custom_call.1} parent=5 // pred_region
      %s118 = ssub.s32 %s8, 1
      %s119 = smul.u32 32, %s13
      %p120 = scmp.lt.s32.totalorder %s119, 255
      %s121 = scalar_select %p120, %s119, 255
      %s122 = smul.addr %s121, 8
      %s123 = scalar_lea.vmem %s0, %s122
      %p124 = pneg %p34
      %p125 = pneg %p31
      %p126 = pneg %p55
      %p127 = pneg %p52
      %p128 = pneg %p81
      %p129 = pneg %p78
      %s130 = smul.u32 32, %s13
      %p131 = scmp.lt.s32.totalorder %s130, 255
      %s132 = scalar_select %p131, %s130, 255
      %s133 = smul.addr %s132, 8
      %s134 = scalar_lea.vmem %s2, %s133
      %s135 = smul.u32 32, %s13
      %p136 = scmp.lt.s32.totalorder %s135, 255
      %s137 = scalar_select %p136, %s135, 255
      %s138 = smul.addr %s137, 8
      %s139 = scalar_lea.vmem %s0, %s138
      %s140 = smul.u32 32, %s13
      %s141 = smul.u32 32, %s13
      %p142 = scmp.lt.s32.totalorder %s141, 255
      %s143 = scalar_select %p142, %s141, 255
      %s144 = smul.addr %s143, 8
      %s145 = scalar_lea.vmem %s2, %s144
      %s146 = smul.u32 32, %s13
      %v147 = vld [vmem:[%s139] sm:$0xff]
      %v148 = vld [vmem:[%s139 + $0x8] sm:$0xff]
      %v149 = vld [vmem:[%s139 + $0x10] sm:$0xff]
      %v150 = vld [vmem:[%s139 + $0x18] sm:$0xff]
      %v151 = vld [vmem:[%s139 + $0x20] sm:$0xff]
      %v152 = vld [vmem:[%s139 + $0x28] sm:$0xff]
      %v153 = vld [vmem:[%s139 + $0x30] sm:$0xff]
      %v154 = vld [vmem:[%s139 + $0x38] sm:$0xff]
      %v155 = vld [vmem:[%s139 + $0x40] sm:$0xff]
      %v156 = vld [vmem:[%s139 + $0x48] sm:$0xff]
      %v157 = vld [vmem:[%s139 + $0x50] sm:$0xff]
      %v158 = vld [vmem:[%s139 + $0x58] sm:$0xff]
      %v159 = vld [vmem:[%s139 + $0x60] sm:$0xff]
      %v160 = vld [vmem:[%s139 + $0x68] sm:$0xff]
      %v161 = vld [vmem:[%s139 + $0x70] sm:$0xff]
      %v162 = vld [vmem:[%s139 + $0x78] sm:$0xff]
      %v163 = vld [vmem:[%s139 + $0x80] sm:$0xff]
      %v164 = vld [vmem:[%s139 + $0x88] sm:$0xff]
      %v165 = vld [vmem:[%s139 + $0x90] sm:$0xff]
      %v166 = vld [vmem:[%s139 + $0x98] sm:$0xff]
      %v167 = vld [vmem:[%s139 + $0xa0] sm:$0xff]
      %v168 = vld [vmem:[%s139 + $0xa8] sm:$0xff]
      %v169 = vld [vmem:[%s139 + $0xb0] sm:$0xff]
      %v170 = vld [vmem:[%s139 + $0xb8] sm:$0xff]
      %v171 = vld [vmem:[%s139 + $0xc0] sm:$0xff]
      %v172 = vld [vmem:[%s139 + $0xc8] sm:$0xff]
      %v173 = vld [vmem:[%s139 + $0xd0] sm:$0xff]
      %v174 = vld [vmem:[%s139 + $0xd8] sm:$0xff]
      %v175 = vld [vmem:[%s139 + $0xe0] sm:$0xff]
      %v176 = vld [vmem:[%s139 + $0xe8] sm:$0xff]
      %v177 = vld [vmem:[%s139 + $0xf0] sm:$0xff]
      %v178 = vld [vmem:[%s139 + $0xf8] sm:$0xff]
      // While loop
      $region29: #{tpu_custom_call.1} parent=27 // loop_pre_header
        _
      $region30: #{tpu_custom_call.1} parent=27 // loop_header
        %s180 = sphi 0, %s182
        %p181 = scmp.ge.s32.totalorder %s180, %s13
        %v185 = vphi 0, %v679
        %v186 = vphi 0, %v680
        %v187 = vphi 0, %v681
        %v188 = vphi 0, %v682
        %v189 = vphi 0, %v683
        %v190 = vphi 0, %v684
        %v191 = vphi 0, %v685
        %v192 = vphi 0, %v686
        %v193 = vphi 0, %v687
        %v194 = vphi 0, %v688
        %v195 = vphi 0, %v689
        %v196 = vphi 0, %v690
        %v197 = vphi 0, %v691
        %v198 = vphi 0, %v692
        %v199 = vphi 0, %v693
        %v200 = vphi 0, %v694
        %v201 = vphi 0, %v695
        %v202 = vphi 0, %v696
        %v203 = vphi 0, %v697
        %v204 = vphi 0, %v698
        %v205 = vphi 0, %v699
        %v206 = vphi 0, %v700
        %v207 = vphi 0, %v701
        %v208 = vphi 0, %v702
        %v209 = vphi 0, %v703
        %v210 = vphi 0, %v704
        %v211 = vphi 0, %v705
        %v212 = vphi 0, %v706
        %v213 = vphi 0, %v707
        %v214 = vphi 0, %v708
        %v215 = vphi 0, %v709
        %v216 = vphi 0, %v710
      $region31: #{tpu_custom_call.1} parent=27 // loop_header_branch
        %184 = sbr.rel (%p181) target = $region35
      $region32: #{tpu_custom_call.1} parent=27 // loop_body
        %s217 = smul.u32 %s180, 2
        %s218 = scalar_lea.vmem %s1, %s217
        %v219 = vld [vmem:[%s218] sm:$0x3]
        %221 = vset.pattern.permute.xlu0 0
        %222 = vperm.xlu0 %221, %v147
        %v223 = vpop.permute.xlu0 %222
        %226 = vset.pattern.permute.xlu0 0
        %227 = vperm.xlu0 %226, %v148
        %v228 = vpop.permute.xlu0 %227
        %231 = vset.pattern.permute.xlu0 0
        %232 = vperm.xlu0 %231, %v149
        %v233 = vpop.permute.xlu0 %232
        %236 = vset.pattern.permute.xlu0 0
        %237 = vperm.xlu0 %236, %v150
        %v238 = vpop.permute.xlu0 %237
        %241 = vset.pattern.permute.xlu0 0
        %242 = vperm.xlu0 %241, %v151
        %v243 = vpop.permute.xlu0 %242
        %246 = vset.pattern.permute.xlu0 0
        %247 = vperm.xlu0 %246, %v152
        %v248 = vpop.permute.xlu0 %247
        %251 = vset.pattern.permute.xlu0 0
        %252 = vperm.xlu0 %251, %v153
        %v253 = vpop.permute.xlu0 %252
        %256 = vset.pattern.permute.xlu0 0
        %257 = vperm.xlu0 %256, %v154
        %v258 = vpop.permute.xlu0 %257
        %261 = vset.pattern.permute.xlu0 0
        %262 = vperm.xlu0 %261, %v155
        %v263 = vpop.permute.xlu0 %262
        %266 = vset.pattern.permute.xlu0 0
        %267 = vperm.xlu0 %266, %v156
        %v268 = vpop.permute.xlu0 %267
        %271 = vset.pattern.permute.xlu0 0
        %272 = vperm.xlu0 %271, %v157
        %v273 = vpop.permute.xlu0 %272
        %276 = vset.pattern.permute.xlu0 0
        %277 = vperm.xlu0 %276, %v158
        %v278 = vpop.permute.xlu0 %277
        %281 = vset.pattern.permute.xlu0 0
        %282 = vperm.xlu0 %281, %v159
        %v283 = vpop.permute.xlu0 %282
        %286 = vset.pattern.permute.xlu0 0
        %287 = vperm.xlu0 %286, %v160
        %v288 = vpop.permute.xlu0 %287
        %291 = vset.pattern.permute.xlu0 0
        %292 = vperm.xlu0 %291, %v161
        %v293 = vpop.permute.xlu0 %292
        %296 = vset.pattern.permute.xlu0 0
        %297 = vperm.xlu0 %296, %v162
        %v298 = vpop.permute.xlu0 %297
        %301 = vset.pattern.permute.xlu0 0
        %302 = vperm.xlu0 %301, %v163
        %v303 = vpop.permute.xlu0 %302
        %306 = vset.pattern.permute.xlu0 0
        %307 = vperm.xlu0 %306, %v164
        %v308 = vpop.permute.xlu0 %307
        %311 = vset.pattern.permute.xlu0 0
        %312 = vperm.xlu0 %311, %v165
        %v313 = vpop.permute.xlu0 %312
        %316 = vset.pattern.permute.xlu0 0
        %317 = vperm.xlu0 %316, %v166
        %v318 = vpop.permute.xlu0 %317
        %321 = vset.pattern.permute.xlu0 0
        %322 = vperm.xlu0 %321, %v167
        %v323 = vpop.permute.xlu0 %322
        %326 = vset.pattern.permute.xlu0 0
        %327 = vperm.xlu0 %326, %v168
        %v328 = vpop.permute.xlu0 %327
        %331 = vset.pattern.permute.xlu0 0
        %332 = vperm.xlu0 %331, %v169
        %v333 = vpop.permute.xlu0 %332
        %336 = vset.pattern.permute.xlu0 0
        %337 = vperm.xlu0 %336, %v170
        %v338 = vpop.permute.xlu0 %337
        %341 = vset.pattern.permute.xlu0 0
        %342 = vperm.xlu0 %341, %v171
        %v343 = vpop.permute.xlu0 %342
        %346 = vset.pattern.permute.xlu0 0
        %347 = vperm.xlu0 %346, %v172
        %v348 = vpop.permute.xlu0 %347
        %351 = vset.pattern.permute.xlu0 0
        %352 = vperm.xlu0 %351, %v173
        %v353 = vpop.permute.xlu0 %352
        %356 = vset.pattern.permute.xlu0 0
        %357 = vperm.xlu0 %356, %v174
        %v358 = vpop.permute.xlu0 %357
        %361 = vset.pattern.permute.xlu0 0
        %362 = vperm.xlu0 %361, %v175
        %v363 = vpop.permute.xlu0 %362
        %366 = vset.pattern.permute.xlu0 0
        %367 = vperm.xlu0 %366, %v176
        %v368 = vpop.permute.xlu0 %367
        %371 = vset.pattern.permute.xlu0 0
        %372 = vperm.xlu0 %371, %v177
        %v373 = vpop.permute.xlu0 %372
        %376 = vset.pattern.permute.xlu0 0
        %377 = vperm.xlu0 %376, %v178
        %v378 = vpop.permute.xlu0 %377
        %v381 = vlaneseq
        %v382 = vshrl.u32 %v381, 7
        %v383 = vsub.s32 0, %v382
        %v384 = vrot.slane %v219, %v383
        %v385 = vlaneseq
        %v386 = vshrl.u32 %v385, 7
        %v387 = vsub.s32 1, %v386
        %v388 = vrot.slane %v219, %v387
        %vm391 = vcmp.eq.f32.partialorder %v223, %v384
        %vm392 = vcmp.eq.f32.partialorder %v223, %v388
        %vm393 = vcmp.eq.f32.partialorder %v228, %v384
        %vm394 = vcmp.eq.f32.partialorder %v228, %v388
        %vm395 = vcmp.eq.f32.partialorder %v233, %v384
        %vm396 = vcmp.eq.f32.partialorder %v233, %v388
        %vm397 = vcmp.eq.f32.partialorder %v238, %v384
        %vm398 = vcmp.eq.f32.partialorder %v238, %v388
        %vm399 = vcmp.eq.f32.partialorder %v243, %v384
        %vm400 = vcmp.eq.f32.partialorder %v243, %v388
        %vm401 = vcmp.eq.f32.partialorder %v248, %v384
        %vm402 = vcmp.eq.f32.partialorder %v248, %v388
        %vm403 = vcmp.eq.f32.partialorder %v253, %v384
        %vm404 = vcmp.eq.f32.partialorder %v253, %v388
        %vm405 = vcmp.eq.f32.partialorder %v258, %v384
        %vm406 = vcmp.eq.f32.partialorder %v258, %v388
        %vm407 = vcmp.eq.f32.partialorder %v263, %v384
        %vm408 = vcmp.eq.f32.partialorder %v263, %v388
        %vm409 = vcmp.eq.f32.partialorder %v268, %v384
        %vm410 = vcmp.eq.f32.partialorder %v268, %v388
        %vm411 = vcmp.eq.f32.partialorder %v273, %v384
        %vm412 = vcmp.eq.f32.partialorder %v273, %v388
        %vm413 = vcmp.eq.f32.partialorder %v278, %v384
        %vm414 = vcmp.eq.f32.partialorder %v278, %v388
        %vm415 = vcmp.eq.f32.partialorder %v283, %v384
        %vm416 = vcmp.eq.f32.partialorder %v283, %v388
        %vm417 = vcmp.eq.f32.partialorder %v288, %v384
        %vm418 = vcmp.eq.f32.partialorder %v288, %v388
        %vm419 = vcmp.eq.f32.partialorder %v293, %v384
        %vm420 = vcmp.eq.f32.partialorder %v293, %v388
        %vm421 = vcmp.eq.f32.partialorder %v298, %v384
        %vm422 = vcmp.eq.f32.partialorder %v298, %v388
        %vm423 = vcmp.eq.f32.partialorder %v303, %v384
        %vm424 = vcmp.eq.f32.partialorder %v303, %v388
        %vm425 = vcmp.eq.f32.partialorder %v308, %v384
        %vm426 = vcmp.eq.f32.partialorder %v308, %v388
        %vm427 = vcmp.eq.f32.partialorder %v313, %v384
        %vm428 = vcmp.eq.f32.partialorder %v313, %v388
        %vm429 = vcmp.eq.f32.partialorder %v318, %v384
        %vm430 = vcmp.eq.f32.partialorder %v318, %v388
        %vm431 = vcmp.eq.f32.partialorder %v323, %v384
        %vm432 = vcmp.eq.f32.partialorder %v323, %v388
        %vm433 = vcmp.eq.f32.partialorder %v328, %v384
        %vm434 = vcmp.eq.f32.partialorder %v328, %v388
        %vm435 = vcmp.eq.f32.partialorder %v333, %v384
        %vm436 = vcmp.eq.f32.partialorder %v333, %v388
        %vm437 = vcmp.eq.f32.partialorder %v338, %v384
        %vm438 = vcmp.eq.f32.partialorder %v338, %v388
        %vm439 = vcmp.eq.f32.partialorder %v343, %v384
        %vm440 = vcmp.eq.f32.partialorder %v343, %v388
        %vm441 = vcmp.eq.f32.partialorder %v348, %v384
        %vm442 = vcmp.eq.f32.partialorder %v348, %v388
        %vm443 = vcmp.eq.f32.partialorder %v353, %v384
        %vm444 = vcmp.eq.f32.partialorder %v353, %v388
        %vm445 = vcmp.eq.f32.partialorder %v358, %v384
        %vm446 = vcmp.eq.f32.partialorder %v358, %v388
        %vm447 = vcmp.eq.f32.partialorder %v363, %v384
        %vm448 = vcmp.eq.f32.partialorder %v363, %v388
        %vm449 = vcmp.eq.f32.partialorder %v368, %v384
        %vm450 = vcmp.eq.f32.partialorder %v368, %v388
        %vm451 = vcmp.eq.f32.partialorder %v373, %v384
        %vm452 = vcmp.eq.f32.partialorder %v373, %v388
        %vm453 = vcmp.eq.f32.partialorder %v378, %v384
        %vm454 = vcmp.eq.f32.partialorder %v378, %v388
        %v455 = vsel %vm391, 1.0, 0.0
        %v456 = vsel %vm392, 1.0, 0.0
        %v457 = vsel %vm393, 1.0, 0.0
        %v458 = vsel %vm394, 1.0, 0.0
        %v459 = vsel %vm395, 1.0, 0.0
        %v460 = vsel %vm396, 1.0, 0.0
        %v461 = vsel %vm397, 1.0, 0.0
        %v462 = vsel %vm398, 1.0, 0.0
        %v463 = vsel %vm399, 1.0, 0.0
        %v464 = vsel %vm400, 1.0, 0.0
        %v465 = vsel %vm401, 1.0, 0.0
        %v466 = vsel %vm402, 1.0, 0.0
        %v467 = vsel %vm403, 1.0, 0.0
        %v468 = vsel %vm404, 1.0, 0.0
        %v469 = vsel %vm405, 1.0, 0.0
        %v470 = vsel %vm406, 1.0, 0.0
        %v471 = vsel %vm407, 1.0, 0.0
        %v472 = vsel %vm408, 1.0, 0.0
        %v473 = vsel %vm409, 1.0, 0.0
        %v474 = vsel %vm410, 1.0, 0.0
        %v475 = vsel %vm411, 1.0, 0.0
        %v476 = vsel %vm412, 1.0, 0.0
        %v477 = vsel %vm413, 1.0, 0.0
        %v478 = vsel %vm414, 1.0, 0.0
        %v479 = vsel %vm415, 1.0, 0.0
        %v480 = vsel %vm416, 1.0, 0.0
        %v481 = vsel %vm417, 1.0, 0.0
        %v482 = vsel %vm418, 1.0, 0.0
        %v483 = vsel %vm419, 1.0, 0.0
        %v484 = vsel %vm420, 1.0, 0.0
        %v485 = vsel %vm421, 1.0, 0.0
        %v486 = vsel %vm422, 1.0, 0.0
        %v487 = vsel %vm423, 1.0, 0.0
        %v488 = vsel %vm424, 1.0, 0.0
        %v489 = vsel %vm425, 1.0, 0.0
        %v490 = vsel %vm426, 1.0, 0.0
        %v491 = vsel %vm427, 1.0, 0.0
        %v492 = vsel %vm428, 1.0, 0.0
        %v493 = vsel %vm429, 1.0, 0.0
        %v494 = vsel %vm430, 1.0, 0.0
        %v495 = vsel %vm431, 1.0, 0.0
        %v496 = vsel %vm432, 1.0, 0.0
        %v497 = vsel %vm433, 1.0, 0.0
        %v498 = vsel %vm434, 1.0, 0.0
        %v499 = vsel %vm435, 1.0, 0.0
        %v500 = vsel %vm436, 1.0, 0.0
        %v501 = vsel %vm437, 1.0, 0.0
        %v502 = vsel %vm438, 1.0, 0.0
        %v503 = vsel %vm439, 1.0, 0.0
        %v504 = vsel %vm440, 1.0, 0.0
        %v505 = vsel %vm441, 1.0, 0.0
        %v506 = vsel %vm442, 1.0, 0.0
        %v507 = vsel %vm443, 1.0, 0.0
        %v508 = vsel %vm444, 1.0, 0.0
        %v509 = vsel %vm445, 1.0, 0.0
        %v510 = vsel %vm446, 1.0, 0.0
        %v511 = vsel %vm447, 1.0, 0.0
        %v512 = vsel %vm448, 1.0, 0.0
        %v513 = vsel %vm449, 1.0, 0.0
        %v514 = vsel %vm450, 1.0, 0.0
        %v515 = vsel %vm451, 1.0, 0.0
        %v516 = vsel %vm452, 1.0, 0.0
        %v517 = vsel %vm453, 1.0, 0.0
        %v518 = vsel %vm454, 1.0, 0.0
        %v519 = vmax.f32 %v455, %v456
        %520 = vmax.xlane.f32.xlu0 %v519
        %v521 = vpop.xlane.xlu0 %520
        %v522 = vmax.f32 %v457, %v458
        %523 = vmax.xlane.f32.xlu0 %v522
        %v524 = vpop.xlane.xlu0 %523
        %v525 = vmax.f32 %v459, %v460
        %526 = vmax.xlane.f32.xlu0 %v525
        %v527 = vpop.xlane.xlu0 %526
        %v528 = vmax.f32 %v461, %v462
        %529 = vmax.xlane.f32.xlu0 %v528
        %v530 = vpop.xlane.xlu0 %529
        %v531 = vmax.f32 %v463, %v464
        %532 = vmax.xlane.f32.xlu0 %v531
        %v533 = vpop.xlane.xlu0 %532
        %v534 = vmax.f32 %v465, %v466
        %535 = vmax.xlane.f32.xlu0 %v534
        %v536 = vpop.xlane.xlu0 %535
        %v537 = vmax.f32 %v467, %v468
        %538 = vmax.xlane.f32.xlu0 %v537
        %v539 = vpop.xlane.xlu0 %538
        %v540 = vmax.f32 %v469, %v470
        %541 = vmax.xlane.f32.xlu0 %v540
        %v542 = vpop.xlane.xlu0 %541
        %v543 = vmax.f32 %v471, %v472
        %544 = vmax.xlane.f32.xlu0 %v543
        %v545 = vpop.xlane.xlu0 %544
        %v546 = vmax.f32 %v473, %v474
        %547 = vmax.xlane.f32.xlu0 %v546
        %v548 = vpop.xlane.xlu0 %547
        %v549 = vmax.f32 %v475, %v476
        %550 = vmax.xlane.f32.xlu0 %v549
        %v551 = vpop.xlane.xlu0 %550
        %v552 = vmax.f32 %v477, %v478
        %553 = vmax.xlane.f32.xlu0 %v552
        %v554 = vpop.xlane.xlu0 %553
        %v555 = vmax.f32 %v479, %v480
        %556 = vmax.xlane.f32.xlu0 %v555
        %v557 = vpop.xlane.xlu0 %556
        %v558 = vmax.f32 %v481, %v482
        %559 = vmax.xlane.f32.xlu0 %v558
        %v560 = vpop.xlane.xlu0 %559
        %v561 = vmax.f32 %v483, %v484
        %562 = vmax.xlane.f32.xlu0 %v561
        %v563 = vpop.xlane.xlu0 %562
        %v564 = vmax.f32 %v485, %v486
        %565 = vmax.xlane.f32.xlu0 %v564
        %v566 = vpop.xlane.xlu0 %565
        %v567 = vmax.f32 %v487, %v488
        %568 = vmax.xlane.f32.xlu0 %v567
        %v569 = vpop.xlane.xlu0 %568
        %v570 = vmax.f32 %v489, %v490
        %571 = vmax.xlane.f32.xlu0 %v570
        %v572 = vpop.xlane.xlu0 %571
        %v573 = vmax.f32 %v491, %v492
        %574 = vmax.xlane.f32.xlu0 %v573
        %v575 = vpop.xlane.xlu0 %574
        %v576 = vmax.f32 %v493, %v494
        %577 = vmax.xlane.f32.xlu0 %v576
        %v578 = vpop.xlane.xlu0 %577
        %v579 = vmax.f32 %v495, %v496
        %580 = vmax.xlane.f32.xlu0 %v579
        %v581 = vpop.xlane.xlu0 %580
        %v582 = vmax.f32 %v497, %v498
        %583 = vmax.xlane.f32.xlu0 %v582
        %v584 = vpop.xlane.xlu0 %583
        %v585 = vmax.f32 %v499, %v500
        %586 = vmax.xlane.f32.xlu0 %v585
        %v587 = vpop.xlane.xlu0 %586
        %v588 = vmax.f32 %v501, %v502
        %589 = vmax.xlane.f32.xlu0 %v588
        %v590 = vpop.xlane.xlu0 %589
        %v591 = vmax.f32 %v503, %v504
        %592 = vmax.xlane.f32.xlu0 %v591
        %v593 = vpop.xlane.xlu0 %592
        %v594 = vmax.f32 %v505, %v506
        %595 = vmax.xlane.f32.xlu0 %v594
        %v596 = vpop.xlane.xlu0 %595
        %v597 = vmax.f32 %v507, %v508
        %598 = vmax.xlane.f32.xlu0 %v597
        %v599 = vpop.xlane.xlu0 %598
        %v600 = vmax.f32 %v509, %v510
        %601 = vmax.xlane.f32.xlu0 %v600
        %v602 = vpop.xlane.xlu0 %601
        %v603 = vmax.f32 %v511, %v512
        %604 = vmax.xlane.f32.xlu0 %v603
        %v605 = vpop.xlane.xlu0 %604
        %v606 = vmax.f32 %v513, %v514
        %607 = vmax.xlane.f32.xlu0 %v606
        %v608 = vpop.xlane.xlu0 %607
        %v609 = vmax.f32 %v515, %v516
        %610 = vmax.xlane.f32.xlu0 %v609
        %v611 = vpop.xlane.xlu0 %610
        %v612 = vmax.f32 %v517, %v518
        %613 = vmax.xlane.f32.xlu0 %v612
        %v614 = vpop.xlane.xlu0 %613
        %vm615 = vcmp.gt.f32.partialorder %v521, 0.0
        %vm616 = vcmp.gt.f32.partialorder %v524, 0.0
        %vm617 = vcmp.gt.f32.partialorder %v527, 0.0
        %vm618 = vcmp.gt.f32.partialorder %v530, 0.0
        %vm619 = vcmp.gt.f32.partialorder %v533, 0.0
        %vm620 = vcmp.gt.f32.partialorder %v536, 0.0
        %vm621 = vcmp.gt.f32.partialorder %v539, 0.0
        %vm622 = vcmp.gt.f32.partialorder %v542, 0.0
        %vm623 = vcmp.gt.f32.partialorder %v545, 0.0
        %vm624 = vcmp.gt.f32.partialorder %v548, 0.0
        %vm625 = vcmp.gt.f32.partialorder %v551, 0.0
        %vm626 = vcmp.gt.f32.partialorder %v554, 0.0
        %vm627 = vcmp.gt.f32.partialorder %v557, 0.0
        %vm628 = vcmp.gt.f32.partialorder %v560, 0.0
        %vm629 = vcmp.gt.f32.partialorder %v563, 0.0
        %vm630 = vcmp.gt.f32.partialorder %v566, 0.0
        %vm631 = vcmp.gt.f32.partialorder %v569, 0.0
        %vm632 = vcmp.gt.f32.partialorder %v572, 0.0
        %vm633 = vcmp.gt.f32.partialorder %v575, 0.0
        %vm634 = vcmp.gt.f32.partialorder %v578, 0.0
        %vm635 = vcmp.gt.f32.partialorder %v581, 0.0
        %vm636 = vcmp.gt.f32.partialorder %v584, 0.0
        %vm637 = vcmp.gt.f32.partialorder %v587, 0.0
        %vm638 = vcmp.gt.f32.partialorder %v590, 0.0
        %vm639 = vcmp.gt.f32.partialorder %v593, 0.0
        %vm640 = vcmp.gt.f32.partialorder %v596, 0.0
        %vm641 = vcmp.gt.f32.partialorder %v599, 0.0
        %vm642 = vcmp.gt.f32.partialorder %v602, 0.0
        %vm643 = vcmp.gt.f32.partialorder %v605, 0.0
        %vm644 = vcmp.gt.f32.partialorder %v608, 0.0
        %vm645 = vcmp.gt.f32.partialorder %v611, 0.0
        %vm646 = vcmp.gt.f32.partialorder %v614, 0.0
        %v647 = vsel %vm615, 1, 0
        %v648 = vsel %vm616, 1, 0
        %v649 = vsel %vm617, 1, 0
        %v650 = vsel %vm618, 1, 0
        %v651 = vsel %vm619, 1, 0
        %v652 = vsel %vm620, 1, 0
        %v653 = vsel %vm621, 1, 0
        %v654 = vsel %vm622, 1, 0
        %v655 = vsel %vm623, 1, 0
        %v656 = vsel %vm624, 1, 0
        %v657 = vsel %vm625, 1, 0
        %v658 = vsel %vm626, 1, 0
        %v659 = vsel %vm627, 1, 0
        %v660 = vsel %vm628, 1, 0
        %v661 = vsel %vm629, 1, 0
        %v662 = vsel %vm630, 1, 0
        %v663 = vsel %vm631, 1, 0
        %v664 = vsel %vm632, 1, 0
        %v665 = vsel %vm633, 1, 0
        %v666 = vsel %vm634, 1, 0
        %v667 = vsel %vm635, 1, 0
        %v668 = vsel %vm636, 1, 0
        %v669 = vsel %vm637, 1, 0
        %v670 = vsel %vm638, 1, 0
        %v671 = vsel %vm639, 1, 0
        %v672 = vsel %vm640, 1, 0
        %v673 = vsel %vm641, 1, 0
        %v674 = vsel %vm642, 1, 0
        %v675 = vsel %vm643, 1, 0
        %v676 = vsel %vm644, 1, 0
        %v677 = vsel %vm645, 1, 0
        %v678 = vsel %vm646, 1, 0
        %v679 = vor.u32 %v185, %v647
        %v680 = vor.u32 %v186, %v648
        %v681 = vor.u32 %v187, %v649
        %v682 = vor.u32 %v188, %v650
        %v683 = vor.u32 %v189, %v651
        %v684 = vor.u32 %v190, %v652
        %v685 = vor.u32 %v191, %v653
        %v686 = vor.u32 %v192, %v654
        %v687 = vor.u32 %v193, %v655
        %v688 = vor.u32 %v194, %v656
        %v689 = vor.u32 %v195, %v657
        %v690 = vor.u32 %v196, %v658
        %v691 = vor.u32 %v197, %v659
        %v692 = vor.u32 %v198, %v660
        %v693 = vor.u32 %v199, %v661
        %v694 = vor.u32 %v200, %v662
        %v695 = vor.u32 %v201, %v663
        %v696 = vor.u32 %v202, %v664
        %v697 = vor.u32 %v203, %v665
        %v698 = vor.u32 %v204, %v666
        %v699 = vor.u32 %v205, %v667
        %v700 = vor.u32 %v206, %v668
        %v701 = vor.u32 %v207, %v669
        %v702 = vor.u32 %v208, %v670
        %v703 = vor.u32 %v209, %v671
        %v704 = vor.u32 %v210, %v672
        %v705 = vor.u32 %v211, %v673
        %v706 = vor.u32 %v212, %v674
        %v707 = vor.u32 %v213, %v675
        %v708 = vor.u32 %v214, %v676
        %v709 = vor.u32 %v215, %v677
        %v710 = vor.u32 %v216, %v678
      $region33: #{tpu_custom_call.1} parent=27 // loop_footer
        %s182 = sadd.s32 %s180, 1
      $region34: #{tpu_custom_call.1} parent=27 // loop_footer_branch
        %179 = sbr.rel target = $region30
      $region35: #{tpu_custom_call.1} parent=27 // loop_exit
        _
      %s711 = smul.u32 %s13, 2
      %s712 = scalar_lea.vmem %s1, %s711
      %v713 = vld [vmem:[%s712] sm:$0x3]
      %v714 = vlaneseq
      %v715 = vshrl.u32 %v714, 7
      %v716 = vadd.s32 %v715, 8
      %v717 = vadd.s32 %v715, 16
      %v718 = vadd.s32 %v715, 24
      %v719 = vadd.s32 %v715, 32
      %v720 = vadd.s32 %v715, 40
      %v721 = vadd.s32 %v715, 48
      %v722 = vadd.s32 %v715, 56
      %v723 = vadd.s32 %v715, 64
      %v724 = vadd.s32 %v715, 72
      %v725 = vadd.s32 %v715, 80
      %v726 = vadd.s32 %v715, 88
      %v727 = vadd.s32 %v715, 96
      %v728 = vadd.s32 %v715, 104
      %v729 = vadd.s32 %v715, 112
      %v730 = vadd.s32 %v715, 120
      %v731 = vadd.s32 %v715, 128
      %v732 = vadd.s32 %v715, 136
      %v733 = vadd.s32 %v715, 144
      %v734 = vadd.s32 %v715, 152
      %v735 = vadd.s32 %v715, 160
      %v736 = vadd.s32 %v715, 168
      %v737 = vadd.s32 %v715, 176
      %v738 = vadd.s32 %v715, 184
      %v739 = vadd.s32 %v715, 192
      %v740 = vadd.s32 %v715, 200
      %v741 = vadd.s32 %v715, 208
      %v742 = vadd.s32 %v715, 216
      %v743 = vadd.s32 %v715, 224
      %v744 = vadd.s32 %v715, 232
      %v745 = vadd.s32 %v715, 240
      %v746 = vadd.s32 %v715, 248
      %v747 = vlaneseq
      %v748 = vand.u32 %v747, 127
      %v749 = vadd.s32 %v748, 128
      %vm750 = vcmp.lt.s32.totalorder %v748, %v715
      %vm751 = vcmp.lt.s32.totalorder %v749, %v715
      %vm752 = vcmp.lt.s32.totalorder %v748, %v716
      %vm753 = vcmp.lt.s32.totalorder %v749, %v716
      %vm754 = vcmp.lt.s32.totalorder %v748, %v717
      %vm755 = vcmp.lt.s32.totalorder %v749, %v717
      %vm756 = vcmp.lt.s32.totalorder %v748, %v718
      %vm757 = vcmp.lt.s32.totalorder %v749, %v718
      %vm758 = vcmp.lt.s32.totalorder %v748, %v719
      %vm759 = vcmp.lt.s32.totalorder %v749, %v719
      %vm760 = vcmp.lt.s32.totalorder %v748, %v720
      %vm761 = vcmp.lt.s32.totalorder %v749, %v720
      %vm762 = vcmp.lt.s32.totalorder %v748, %v721
      %vm763 = vcmp.lt.s32.totalorder %v749, %v721
      %vm764 = vcmp.lt.s32.totalorder %v748, %v722
      %vm765 = vcmp.lt.s32.totalorder %v749, %v722
      %vm766 = vcmp.lt.s32.totalorder %v748, %v723
      %vm767 = vcmp.lt.s32.totalorder %v749, %v723
      %vm768 = vcmp.lt.s32.totalorder %v748, %v724
      %vm769 = vcmp.lt.s32.totalorder %v749, %v724
      %vm770 = vcmp.lt.s32.totalorder %v748, %v725
      %vm771 = vcmp.lt.s32.totalorder %v749, %v725
      %vm772 = vcmp.lt.s32.totalorder %v748, %v726
      %vm773 = vcmp.lt.s32.totalorder %v749, %v726
      %vm774 = vcmp.lt.s32.totalorder %v748, %v727
      %vm775 = vcmp.lt.s32.totalorder %v749, %v727
      %vm776 = vcmp.lt.s32.totalorder %v748, %v728
      %vm777 = vcmp.lt.s32.totalorder %v749, %v728
      %vm778 = vcmp.lt.s32.totalorder %v748, %v729
      %vm779 = vcmp.lt.s32.totalorder %v749, %v729
      %vm780 = vcmp.lt.s32.totalorder %v748, %v730
      %vm781 = vcmp.lt.s32.totalorder %v749, %v730
      %vm782 = vcmp.lt.s32.totalorder %v748, %v731
      %vm783 = vcmp.lt.s32.totalorder %v749, %v731
      %vm784 = vcmp.lt.s32.totalorder %v748, %v732
      %vm785 = vcmp.lt.s32.totalorder %v749, %v732
      %vm786 = vcmp.lt.s32.totalorder %v748, %v733
      %vm787 = vcmp.lt.s32.totalorder %v749, %v733
      %vm788 = vcmp.lt.s32.totalorder %v748, %v734
      %vm789 = vcmp.lt.s32.totalorder %v749, %v734
      %vm790 = vcmp.lt.s32.totalorder %v748, %v735
      %vm791 = vcmp.lt.s32.totalorder %v749, %v735
      %vm792 = vcmp.lt.s32.totalorder %v748, %v736
      %vm793 = vcmp.lt.s32.totalorder %v749, %v736
      %vm794 = vcmp.lt.s32.totalorder %v748, %v737
      %vm795 = vcmp.lt.s32.totalorder %v749, %v737
      %vm796 = vcmp.lt.s32.totalorder %v748, %v738
      %vm797 = vcmp.lt.s32.totalorder %v749, %v738
      %vm798 = vcmp.lt.s32.totalorder %v748, %v739
      %vm799 = vcmp.lt.s32.totalorder %v749, %v739
      %vm800 = vcmp.lt.s32.totalorder %v748, %v740
      %vm801 = vcmp.lt.s32.totalorder %v749, %v740
      %vm802 = vcmp.lt.s32.totalorder %v748, %v741
      %vm803 = vcmp.lt.s32.totalorder %v749, %v741
      %vm804 = vcmp.lt.s32.totalorder %v748, %v742
      %vm805 = vcmp.lt.s32.totalorder %v749, %v742
      %vm806 = vcmp.lt.s32.totalorder %v748, %v743
      %vm807 = vcmp.lt.s32.totalorder %v749, %v743
      %vm808 = vcmp.lt.s32.totalorder %v748, %v744
      %vm809 = vcmp.lt.s32.totalorder %v749, %v744
      %vm810 = vcmp.lt.s32.totalorder %v748, %v745
      %vm811 = vcmp.lt.s32.totalorder %v749, %v745
      %vm812 = vcmp.lt.s32.totalorder %v748, %v746
      %vm813 = vcmp.lt.s32.totalorder %v749, %v746
      %815 = vset.pattern.permute.xlu0 0
      %816 = vperm.xlu0 %815, %v147
      %v817 = vpop.permute.xlu0 %816
      %820 = vset.pattern.permute.xlu0 0
      %821 = vperm.xlu0 %820, %v148
      %v822 = vpop.permute.xlu0 %821
      %825 = vset.pattern.permute.xlu0 0
      %826 = vperm.xlu0 %825, %v149
      %v827 = vpop.permute.xlu0 %826
      %830 = vset.pattern.permute.xlu0 0
      %831 = vperm.xlu0 %830, %v150
      %v832 = vpop.permute.xlu0 %831
      %835 = vset.pattern.permute.xlu0 0
      %836 = vperm.xlu0 %835, %v151
      %v837 = vpop.permute.xlu0 %836
      %840 = vset.pattern.permute.xlu0 0
      %841 = vperm.xlu0 %840, %v152
      %v842 = vpop.permute.xlu0 %841
      %845 = vset.pattern.permute.xlu0 0
      %846 = vperm.xlu0 %845, %v153
      %v847 = vpop.permute.xlu0 %846
      %850 = vset.pattern.permute.xlu0 0
      %851 = vperm.xlu0 %850, %v154
      %v852 = vpop.permute.xlu0 %851
      %855 = vset.pattern.permute.xlu0 0
      %856 = vperm.xlu0 %855, %v155
      %v857 = vpop.permute.xlu0 %856
      %860 = vset.pattern.permute.xlu0 0
      %861 = vperm.xlu0 %860, %v156
      %v862 = vpop.permute.xlu0 %861
      %865 = vset.pattern.permute.xlu0 0
      %866 = vperm.xlu0 %865, %v157
      %v867 = vpop.permute.xlu0 %866
      %870 = vset.pattern.permute.xlu0 0
      %871 = vperm.xlu0 %870, %v158
      %v872 = vpop.permute.xlu0 %871
      %875 = vset.pattern.permute.xlu0 0
      %876 = vperm.xlu0 %875, %v159
      %v877 = vpop.permute.xlu0 %876
      %880 = vset.pattern.permute.xlu0 0
      %881 = vperm.xlu0 %880, %v160
      %v882 = vpop.permute.xlu0 %881
      %885 = vset.pattern.permute.xlu0 0
      %886 = vperm.xlu0 %885, %v161
      %v887 = vpop.permute.xlu0 %886
      %890 = vset.pattern.permute.xlu0 0
      %891 = vperm.xlu0 %890, %v162
      %v892 = vpop.permute.xlu0 %891
      %895 = vset.pattern.permute.xlu0 0
      %896 = vperm.xlu0 %895, %v163
      %v897 = vpop.permute.xlu0 %896
      %900 = vset.pattern.permute.xlu0 0
      %901 = vperm.xlu0 %900, %v164
      %v902 = vpop.permute.xlu0 %901
      %905 = vset.pattern.permute.xlu0 0
      %906 = vperm.xlu0 %905, %v165
      %v907 = vpop.permute.xlu0 %906
      %910 = vset.pattern.permute.xlu0 0
      %911 = vperm.xlu0 %910, %v166
      %v912 = vpop.permute.xlu0 %911
      %915 = vset.pattern.permute.xlu0 0
      %916 = vperm.xlu0 %915, %v167
      %v917 = vpop.permute.xlu0 %916
      %920 = vset.pattern.permute.xlu0 0
      %921 = vperm.xlu0 %920, %v168
      %v922 = vpop.permute.xlu0 %921
      %925 = vset.pattern.permute.xlu0 0
      %926 = vperm.xlu0 %925, %v169
      %v927 = vpop.permute.xlu0 %926
      %930 = vset.pattern.permute.xlu0 0
      %931 = vperm.xlu0 %930, %v170
      %v932 = vpop.permute.xlu0 %931
      %935 = vset.pattern.permute.xlu0 0
      %936 = vperm.xlu0 %935, %v171
      %v937 = vpop.permute.xlu0 %936
      %940 = vset.pattern.permute.xlu0 0
      %941 = vperm.xlu0 %940, %v172
      %v942 = vpop.permute.xlu0 %941
      %945 = vset.pattern.permute.xlu0 0
      %946 = vperm.xlu0 %945, %v173
      %v947 = vpop.permute.xlu0 %946
      %950 = vset.pattern.permute.xlu0 0
      %951 = vperm.xlu0 %950, %v174
      %v952 = vpop.permute.xlu0 %951
      %955 = vset.pattern.permute.xlu0 0
      %956 = vperm.xlu0 %955, %v175
      %v957 = vpop.permute.xlu0 %956
      %960 = vset.pattern.permute.xlu0 0
      %961 = vperm.xlu0 %960, %v176
      %v962 = vpop.permute.xlu0 %961
      %965 = vset.pattern.permute.xlu0 0
      %966 = vperm.xlu0 %965, %v177
      %v967 = vpop.permute.xlu0 %966
      %970 = vset.pattern.permute.xlu0 0
      %971 = vperm.xlu0 %970, %v178
      %v972 = vpop.permute.xlu0 %971
      %v975 = vlaneseq
      %v976 = vshrl.u32 %v975, 7
      %v977 = vsub.s32 0, %v976
      %v978 = vrot.slane %v713, %v977
      %v979 = vlaneseq
      %v980 = vshrl.u32 %v979, 7
      %v981 = vsub.s32 1, %v980
      %v982 = vrot.slane %v713, %v981
      %vm985 = vcmp.eq.f32.partialorder %v817, %v978
      %vm986 = vcmp.eq.f32.partialorder %v817, %v982
      %vm987 = vcmp.eq.f32.partialorder %v822, %v978
      %vm988 = vcmp.eq.f32.partialorder %v822, %v982
      %vm989 = vcmp.eq.f32.partialorder %v827, %v978
      %vm990 = vcmp.eq.f32.partialorder %v827, %v982
      %vm991 = vcmp.eq.f32.partialorder %v832, %v978
      %vm992 = vcmp.eq.f32.partialorder %v832, %v982
      %vm993 = vcmp.eq.f32.partialorder %v837, %v978
      %vm994 = vcmp.eq.f32.partialorder %v837, %v982
      %vm995 = vcmp.eq.f32.partialorder %v842, %v978
      %vm996 = vcmp.eq.f32.partialorder %v842, %v982
      %vm997 = vcmp.eq.f32.partialorder %v847, %v978
      %vm998 = vcmp.eq.f32.partialorder %v847, %v982
      %vm999 = vcmp.eq.f32.partialorder %v852, %v978
      %vm1000 = vcmp.eq.f32.partialorder %v852, %v982
      %vm1001 = vcmp.eq.f32.partialorder %v857, %v978
      %vm1002 = vcmp.eq.f32.partialorder %v857, %v982
      %vm1003 = vcmp.eq.f32.partialorder %v862, %v978
      %vm1004 = vcmp.eq.f32.partialorder %v862, %v982
      %vm1005 = vcmp.eq.f32.partialorder %v867, %v978
      %vm1006 = vcmp.eq.f32.partialorder %v867, %v982
      %vm1007 = vcmp.eq.f32.partialorder %v872, %v978
      %vm1008 = vcmp.eq.f32.partialorder %v872, %v982
      %vm1009 = vcmp.eq.f32.partialorder %v877, %v978
      %vm1010 = vcmp.eq.f32.partialorder %v877, %v982
      %vm1011 = vcmp.eq.f32.partialorder %v882, %v978
      %vm1012 = vcmp.eq.f32.partialorder %v882, %v982
      %vm1013 = vcmp.eq.f32.partialorder %v887, %v978
      %vm1014 = vcmp.eq.f32.partialorder %v887, %v982
      %vm1015 = vcmp.eq.f32.partialorder %v892, %v978
      %vm1016 = vcmp.eq.f32.partialorder %v892, %v982
      %vm1017 = vcmp.eq.f32.partialorder %v897, %v978
      %vm1018 = vcmp.eq.f32.partialorder %v897, %v982
      %vm1019 = vcmp.eq.f32.partialorder %v902, %v978
      %vm1020 = vcmp.eq.f32.partialorder %v902, %v982
      %vm1021 = vcmp.eq.f32.partialorder %v907, %v978
      %vm1022 = vcmp.eq.f32.partialorder %v907, %v982
      %vm1023 = vcmp.eq.f32.partialorder %v912, %v978
      %vm1024 = vcmp.eq.f32.partialorder %v912, %v982
      %vm1025 = vcmp.eq.f32.partialorder %v917, %v978
      %vm1026 = vcmp.eq.f32.partialorder %v917, %v982
      %vm1027 = vcmp.eq.f32.partialorder %v922, %v978
      %vm1028 = vcmp.eq.f32.partialorder %v922, %v982
      %vm1029 = vcmp.eq.f32.partialorder %v927, %v978
      %vm1030 = vcmp.eq.f32.partialorder %v927, %v982
      %vm1031 = vcmp.eq.f32.partialorder %v932, %v978
      %vm1032 = vcmp.eq.f32.partialorder %v932, %v982
      %vm1033 = vcmp.eq.f32.partialorder %v937, %v978
      %vm1034 = vcmp.eq.f32.partialorder %v937, %v982
      %vm1035 = vcmp.eq.f32.partialorder %v942, %v978
      %vm1036 = vcmp.eq.f32.partialorder %v942, %v982
      %vm1037 = vcmp.eq.f32.partialorder %v947, %v978
      %vm1038 = vcmp.eq.f32.partialorder %v947, %v982
      %vm1039 = vcmp.eq.f32.partialorder %v952, %v978
      %vm1040 = vcmp.eq.f32.partialorder %v952, %v982
      %vm1041 = vcmp.eq.f32.partialorder %v957, %v978
      %vm1042 = vcmp.eq.f32.partialorder %v957, %v982
      %vm1043 = vcmp.eq.f32.partialorder %v962, %v978
      %vm1044 = vcmp.eq.f32.partialorder %v962, %v982
      %vm1045 = vcmp.eq.f32.partialorder %v967, %v978
      %vm1046 = vcmp.eq.f32.partialorder %v967, %v982
      %vm1047 = vcmp.eq.f32.partialorder %v972, %v978
      %vm1048 = vcmp.eq.f32.partialorder %v972, %v982
      %vm1049 = vmand %vm985, %vm750
      %vm1050 = vmand %vm986, %vm751
      %vm1051 = vmand %vm987, %vm752
      %vm1052 = vmand %vm988, %vm753
      %vm1053 = vmand %vm989, %vm754
      %vm1054 = vmand %vm990, %vm755
      %vm1055 = vmand %vm991, %vm756
      %vm1056 = vmand %vm992, %vm757
      %vm1057 = vmand %vm993, %vm758
      %vm1058 = vmand %vm994, %vm759
      %vm1059 = vmand %vm995, %vm760
      %vm1060 = vmand %vm996, %vm761
      %vm1061 = vmand %vm997, %vm762
      %vm1062 = vmand %vm998, %vm763
      %vm1063 = vmand %vm999, %vm764
      %vm1064 = vmand %vm1000, %vm765
      %vm1065 = vmand %vm1001, %vm766
      %vm1066 = vmand %vm1002, %vm767
      %vm1067 = vmand %vm1003, %vm768
      %vm1068 = vmand %vm1004, %vm769
      %vm1069 = vmand %vm1005, %vm770
      %vm1070 = vmand %vm1006, %vm771
      %vm1071 = vmand %vm1007, %vm772
      %vm1072 = vmand %vm1008, %vm773
      %vm1073 = vmand %vm1009, %vm774
      %vm1074 = vmand %vm1010, %vm775
      %vm1075 = vmand %vm1011, %vm776
      %vm1076 = vmand %vm1012, %vm777
      %vm1077 = vmand %vm1013, %vm778
      %vm1078 = vmand %vm1014, %vm779
      %vm1079 = vmand %vm1015, %vm780
      %vm1080 = vmand %vm1016, %vm781
      %vm1081 = vmand %vm1017, %vm782
      %vm1082 = vmand %vm1018, %vm783
      %vm1083 = vmand %vm1019, %vm784
      %vm1084 = vmand %vm1020, %vm785
      %vm1085 = vmand %vm1021, %vm786
      %vm1086 = vmand %vm1022, %vm787
      %vm1087 = vmand %vm1023, %vm788
      %vm1088 = vmand %vm1024, %vm789
      %vm1089 = vmand %vm1025, %vm790
      %vm1090 = vmand %vm1026, %vm791
      %vm1091 = vmand %vm1027, %vm792
      %vm1092 = vmand %vm1028, %vm793
      %vm1093 = vmand %vm1029, %vm794
      %vm1094 = vmand %vm1030, %vm795
      %vm1095 = vmand %vm1031, %vm796
      %vm1096 = vmand %vm1032, %vm797
      %vm1097 = vmand %vm1033, %vm798
      %vm1098 = vmand %vm1034, %vm799
      %vm1099 = vmand %vm1035, %vm800
      %vm1100 = vmand %vm1036, %vm801
      %vm1101 = vmand %vm1037, %vm802
      %vm1102 = vmand %vm1038, %vm803
      %vm1103 = vmand %vm1039, %vm804
      %vm1104 = vmand %vm1040, %vm805
      %vm1105 = vmand %vm1041, %vm806
      %vm1106 = vmand %vm1042, %vm807
      %vm1107 = vmand %vm1043, %vm808
      %vm1108 = vmand %vm1044, %vm809
      %vm1109 = vmand %vm1045, %vm810
      %vm1110 = vmand %vm1046, %vm811
      %vm1111 = vmand %vm1047, %vm812
      %vm1112 = vmand %vm1048, %vm813
      %v1113 = vsel %vm1049, 1.0, 0.0
      %v1114 = vsel %vm1050, 1.0, 0.0
      %v1115 = vsel %vm1051, 1.0, 0.0
      %v1116 = vsel %vm1052, 1.0, 0.0
      %v1117 = vsel %vm1053, 1.0, 0.0
      %v1118 = vsel %vm1054, 1.0, 0.0
      %v1119 = vsel %vm1055, 1.0, 0.0
      %v1120 = vsel %vm1056, 1.0, 0.0
      %v1121 = vsel %vm1057, 1.0, 0.0
      %v1122 = vsel %vm1058, 1.0, 0.0
      %v1123 = vsel %vm1059, 1.0, 0.0
      %v1124 = vsel %vm1060, 1.0, 0.0
      %v1125 = vsel %vm1061, 1.0, 0.0
      %v1126 = vsel %vm1062, 1.0, 0.0
      %v1127 = vsel %vm1063, 1.0, 0.0
      %v1128 = vsel %vm1064, 1.0, 0.0
      %v1129 = vsel %vm1065, 1.0, 0.0
      %v1130 = vsel %vm1066, 1.0, 0.0
      %v1131 = vsel %vm1067, 1.0, 0.0
      %v1132 = vsel %vm1068, 1.0, 0.0
      %v1133 = vsel %vm1069, 1.0, 0.0
      %v1134 = vsel %vm1070, 1.0, 0.0
      %v1135 = vsel %vm1071, 1.0, 0.0
      %v1136 = vsel %vm1072, 1.0, 0.0
      %v1137 = vsel %vm1073, 1.0, 0.0
      %v1138 = vsel %vm1074, 1.0, 0.0
      %v1139 = vsel %vm1075, 1.0, 0.0
      %v1140 = vsel %vm1076, 1.0, 0.0
      %v1141 = vsel %vm1077, 1.0, 0.0
      %v1142 = vsel %vm1078, 1.0, 0.0
      %v1143 = vsel %vm1079, 1.0, 0.0
      %v1144 = vsel %vm1080, 1.0, 0.0
      %v1145 = vsel %vm1081, 1.0, 0.0
      %v1146 = vsel %vm1082, 1.0, 0.0
      %v1147 = vsel %vm1083, 1.0, 0.0
      %v1148 = vsel %vm1084, 1.0, 0.0
      %v1149 = vsel %vm1085, 1.0, 0.0
      %v1150 = vsel %vm1086, 1.0, 0.0
      %v1151 = vsel %vm1087, 1.0, 0.0
      %v1152 = vsel %vm1088, 1.0, 0.0
      %v1153 = vsel %vm1089, 1.0, 0.0
      %v1154 = vsel %vm1090, 1.0, 0.0
      %v1155 = vsel %vm1091, 1.0, 0.0
      %v1156 = vsel %vm1092, 1.0, 0.0
      %v1157 = vsel %vm1093, 1.0, 0.0
      %v1158 = vsel %vm1094, 1.0, 0.0
      %v1159 = vsel %vm1095, 1.0, 0.0
      %v1160 = vsel %vm1096, 1.0, 0.0
      %v1161 = vsel %vm1097, 1.0, 0.0
      %v1162 = vsel %vm1098, 1.0, 0.0
      %v1163 = vsel %vm1099, 1.0, 0.0
      %v1164 = vsel %vm1100, 1.0, 0.0
      %v1165 = vsel %vm1101, 1.0, 0.0
      %v1166 = vsel %vm1102, 1.0, 0.0
      %v1167 = vsel %vm1103, 1.0, 0.0
      %v1168 = vsel %vm1104, 1.0, 0.0
      %v1169 = vsel %vm1105, 1.0, 0.0
      %v1170 = vsel %vm1106, 1.0, 0.0
      %v1171 = vsel %vm1107, 1.0, 0.0
      %v1172 = vsel %vm1108, 1.0, 0.0
      %v1173 = vsel %vm1109, 1.0, 0.0
      %v1174 = vsel %vm1110, 1.0, 0.0
      %v1175 = vsel %vm1111, 1.0, 0.0
      %v1176 = vsel %vm1112, 1.0, 0.0
      %v1177 = vmax.f32 %v1113, %v1114
      %1178 = vmax.xlane.f32.xlu0 %v1177
      %v1179 = vpop.xlane.xlu0 %1178
      %v1180 = vmax.f32 %v1115, %v1116
      %1181 = vmax.xlane.f32.xlu0 %v1180
      %v1182 = vpop.xlane.xlu0 %1181
      %v1183 = vmax.f32 %v1117, %v1118
      %1184 = vmax.xlane.f32.xlu0 %v1183
      %v1185 = vpop.xlane.xlu0 %1184
      %v1186 = vmax.f32 %v1119, %v1120
      %1187 = vmax.xlane.f32.xlu0 %v1186
      %v1188 = vpop.xlane.xlu0 %1187
      %v1189 = vmax.f32 %v1121, %v1122
      %1190 = vmax.xlane.f32.xlu0 %v1189
      %v1191 = vpop.xlane.xlu0 %1190
      %v1192 = vmax.f32 %v1123, %v1124
      %1193 = vmax.xlane.f32.xlu0 %v1192
      %v1194 = vpop.xlane.xlu0 %1193
      %v1195 = vmax.f32 %v1125, %v1126
      %1196 = vmax.xlane.f32.xlu0 %v1195
      %v1197 = vpop.xlane.xlu0 %1196
      %v1198 = vmax.f32 %v1127, %v1128
      %1199 = vmax.xlane.f32.xlu0 %v1198
      %v1200 = vpop.xlane.xlu0 %1199
      %v1201 = vmax.f32 %v1129, %v1130
      %1202 = vmax.xlane.f32.xlu0 %v1201
      %v1203 = vpop.xlane.xlu0 %1202
      %v1204 = vmax.f32 %v1131, %v1132
      %1205 = vmax.xlane.f32.xlu0 %v1204
      %v1206 = vpop.xlane.xlu0 %1205
      %v1207 = vmax.f32 %v1133, %v1134
      %1208 = vmax.xlane.f32.xlu0 %v1207
      %v1209 = vpop.xlane.xlu0 %1208
      %v1210 = vmax.f32 %v1135, %v1136
      %1211 = vmax.xlane.f32.xlu0 %v1210
      %v1212 = vpop.xlane.xlu0 %1211
      %v1213 = vmax.f32 %v1137, %v1138
      %1214 = vmax.xlane.f32.xlu0 %v1213
      %v1215 = vpop.xlane.xlu0 %1214
      %v1216 = vmax.f32 %v1139, %v1140
      %1217 = vmax.xlane.f32.xlu0 %v1216
      %v1218 = vpop.xlane.xlu0 %1217
      %v1219 = vmax.f32 %v1141, %v1142
      %1220 = vmax.xlane.f32.xlu0 %v1219
      %v1221 = vpop.xlane.xlu0 %1220
      %v1222 = vmax.f32 %v1143, %v1144
      %1223 = vmax.xlane.f32.xlu0 %v1222
      %v1224 = vpop.xlane.xlu0 %1223
      %v1225 = vmax.f32 %v1145, %v1146
      %1226 = vmax.xlane.f32.xlu0 %v1225
      %v1227 = vpop.xlane.xlu0 %1226
      %v1228 = vmax.f32 %v1147, %v1148
      %1229 = vmax.xlane.f32.xlu0 %v1228
      %v1230 = vpop.xlane.xlu0 %1229
      %v1231 = vmax.f32 %v1149, %v1150
      %1232 = vmax.xlane.f32.xlu0 %v1231
      %v1233 = vpop.xlane.xlu0 %1232
      %v1234 = vmax.f32 %v1151, %v1152
      %1235 = vmax.xlane.f32.xlu0 %v1234
      %v1236 = vpop.xlane.xlu0 %1235
      %v1237 = vmax.f32 %v1153, %v1154
      %1238 = vmax.xlane.f32.xlu0 %v1237
      %v1239 = vpop.xlane.xlu0 %1238
      %v1240 = vmax.f32 %v1155, %v1156
      %1241 = vmax.xlane.f32.xlu0 %v1240
      %v1242 = vpop.xlane.xlu0 %1241
      %v1243 = vmax.f32 %v1157, %v1158
      %1244 = vmax.xlane.f32.xlu0 %v1243
      %v1245 = vpop.xlane.xlu0 %1244
      %v1246 = vmax.f32 %v1159, %v1160
      %1247 = vmax.xlane.f32.xlu0 %v1246
      %v1248 = vpop.xlane.xlu0 %1247
      %v1249 = vmax.f32 %v1161, %v1162
      %1250 = vmax.xlane.f32.xlu0 %v1249
      %v1251 = vpop.xlane.xlu0 %1250
      %v1252 = vmax.f32 %v1163, %v1164
      %1253 = vmax.xlane.f32.xlu0 %v1252
      %v1254 = vpop.xlane.xlu0 %1253
      %v1255 = vmax.f32 %v1165, %v1166
      %1256 = vmax.xlane.f32.xlu0 %v1255
      %v1257 = vpop.xlane.xlu0 %1256
      %v1258 = vmax.f32 %v1167, %v1168
      %1259 = vmax.xlane.f32.xlu0 %v1258
      %v1260 = vpop.xlane.xlu0 %1259
      %v1261 = vmax.f32 %v1169, %v1170
      %1262 = vmax.xlane.f32.xlu0 %v1261
      %v1263 = vpop.xlane.xlu0 %1262
      %v1264 = vmax.f32 %v1171, %v1172
      %1265 = vmax.xlane.f32.xlu0 %v1264
      %v1266 = vpop.xlane.xlu0 %1265
      %v1267 = vmax.f32 %v1173, %v1174
      %1268 = vmax.xlane.f32.xlu0 %v1267
      %v1269 = vpop.xlane.xlu0 %1268
      %v1270 = vmax.f32 %v1175, %v1176
      %1271 = vmax.xlane.f32.xlu0 %v1270
      %v1272 = vpop.xlane.xlu0 %1271
      %vm1273 = vcmp.gt.f32.partialorder %v1179, 0.0
      %vm1274 = vcmp.gt.f32.partialorder %v1182, 0.0
      %vm1275 = vcmp.gt.f32.partialorder %v1185, 0.0
      %vm1276 = vcmp.gt.f32.partialorder %v1188, 0.0
      %vm1277 = vcmp.gt.f32.partialorder %v1191, 0.0
      %vm1278 = vcmp.gt.f32.partialorder %v1194, 0.0
      %vm1279 = vcmp.gt.f32.partialorder %v1197, 0.0
      %vm1280 = vcmp.gt.f32.partialorder %v1200, 0.0
      %vm1281 = vcmp.gt.f32.partialorder %v1203, 0.0
      %vm1282 = vcmp.gt.f32.partialorder %v1206, 0.0
      %vm1283 = vcmp.gt.f32.partialorder %v1209, 0.0
      %vm1284 = vcmp.gt.f32.partialorder %v1212, 0.0
      %vm1285 = vcmp.gt.f32.partialorder %v1215, 0.0
      %vm1286 = vcmp.gt.f32.partialorder %v1218, 0.0
      %vm1287 = vcmp.gt.f32.partialorder %v1221, 0.0
      %vm1288 = vcmp.gt.f32.partialorder %v1224, 0.0
      %vm1289 = vcmp.gt.f32.partialorder %v1227, 0.0
      %vm1290 = vcmp.gt.f32.partialorder %v1230, 0.0
      %vm1291 = vcmp.gt.f32.partialorder %v1233, 0.0
      %vm1292 = vcmp.gt.f32.partialorder %v1236, 0.0
      %vm1293 = vcmp.gt.f32.partialorder %v1239, 0.0
      %vm1294 = vcmp.gt.f32.partialorder %v1242, 0.0
      %vm1295 = vcmp.gt.f32.partialorder %v1245, 0.0
      %vm1296 = vcmp.gt.f32.partialorder %v1248, 0.0
      %vm1297 = vcmp.gt.f32.partialorder %v1251, 0.0
      %vm1298 = vcmp.gt.f32.partialorder %v1254, 0.0
      %vm1299 = vcmp.gt.f32.partialorder %v1257, 0.0
      %vm1300 = vcmp.gt.f32.partialorder %v1260, 0.0
      %vm1301 = vcmp.gt.f32.partialorder %v1263, 0.0
      %vm1302 = vcmp.gt.f32.partialorder %v1266, 0.0
      %vm1303 = vcmp.gt.f32.partialorder %v1269, 0.0
      %vm1304 = vcmp.gt.f32.partialorder %v1272, 0.0
      %v1305 = vsel %vm1273, 1, 0
      %v1306 = vsel %vm1274, 1, 0
      %v1307 = vsel %vm1275, 1, 0
      %v1308 = vsel %vm1276, 1, 0
      %v1309 = vsel %vm1277, 1, 0
      %v1310 = vsel %vm1278, 1, 0
      %v1311 = vsel %vm1279, 1, 0
      %v1312 = vsel %vm1280, 1, 0
      %v1313 = vsel %vm1281, 1, 0
      %v1314 = vsel %vm1282, 1, 0
      %v1315 = vsel %vm1283, 1, 0
      %v1316 = vsel %vm1284, 1, 0
      %v1317 = vsel %vm1285, 1, 0
      %v1318 = vsel %vm1286, 1, 0
      %v1319 = vsel %vm1287, 1, 0
      %v1320 = vsel %vm1288, 1, 0
      %v1321 = vsel %vm1289, 1, 0
      %v1322 = vsel %vm1290, 1, 0
      %v1323 = vsel %vm1291, 1, 0
      %v1324 = vsel %vm1292, 1, 0
      %v1325 = vsel %vm1293, 1, 0
      %v1326 = vsel %vm1294, 1, 0
      %v1327 = vsel %vm1295, 1, 0
      %v1328 = vsel %vm1296, 1, 0
      %v1329 = vsel %vm1297, 1, 0
      %v1330 = vsel %vm1298, 1, 0
      %v1331 = vsel %vm1299, 1, 0
      %v1332 = vsel %vm1300, 1, 0
      %v1333 = vsel %vm1301, 1, 0
      %v1334 = vsel %vm1302, 1, 0
      %v1335 = vsel %vm1303, 1, 0
      %v1336 = vsel %vm1304, 1, 0
      %v1337 = vor.u32 %v185, %v1305
      %v1338 = vor.u32 %v186, %v1306
      %v1339 = vor.u32 %v187, %v1307
      %v1340 = vor.u32 %v188, %v1308
      %v1341 = vor.u32 %v189, %v1309
      %v1342 = vor.u32 %v190, %v1310
      %v1343 = vor.u32 %v191, %v1311
      %v1344 = vor.u32 %v192, %v1312
      %v1345 = vor.u32 %v193, %v1313
      %v1346 = vor.u32 %v194, %v1314
      %v1347 = vor.u32 %v195, %v1315
      %v1348 = vor.u32 %v196, %v1316
      %v1349 = vor.u32 %v197, %v1317
      %v1350 = vor.u32 %v198, %v1318
      %v1351 = vor.u32 %v199, %v1319
      %v1352 = vor.u32 %v200, %v1320
      %v1353 = vor.u32 %v201, %v1321
      %v1354 = vor.u32 %v202, %v1322
      %v1355 = vor.u32 %v203, %v1323
      %v1356 = vor.u32 %v204, %v1324
      %v1357 = vor.u32 %v205, %v1325
      %v1358 = vor.u32 %v206, %v1326
      %v1359 = vor.u32 %v207, %v1327
      %v1360 = vor.u32 %v208, %v1328
      %v1361 = vor.u32 %v209, %v1329
      %v1362 = vor.u32 %v210, %v1330
      %v1363 = vor.u32 %v211, %v1331
      %v1364 = vor.u32 %v212, %v1332
      %v1365 = vor.u32 %v213, %v1333
      %v1366 = vor.u32 %v214, %v1334
      %v1367 = vor.u32 %v215, %v1335
      %v1368 = vor.u32 %v216, %v1336
      %s1369 = smul.u32 %s13, 256
      %v1370 = vstv %s1369
      %v1371 = vadd.s32 %v1370, %v715
      %v1372 = vadd.s32 %v1370, %v716
      %v1373 = vadd.s32 %v1370, %v717
      %v1374 = vadd.s32 %v1370, %v718
      %v1375 = vadd.s32 %v1370, %v719
      %v1376 = vadd.s32 %v1370, %v720
      %v1377 = vadd.s32 %v1370, %v721
      %v1378 = vadd.s32 %v1370, %v722
      %v1379 = vadd.s32 %v1370, %v723
      %v1380 = vadd.s32 %v1370, %v724
      %v1381 = vadd.s32 %v1370, %v725
      %v1382 = vadd.s32 %v1370, %v726
      %v1383 = vadd.s32 %v1370, %v727
      %v1384 = vadd.s32 %v1370, %v728
      %v1385 = vadd.s32 %v1370, %v729
      %v1386 = vadd.s32 %v1370, %v730
      %v1387 = vadd.s32 %v1370, %v731
      %v1388 = vadd.s32 %v1370, %v732
      %v1389 = vadd.s32 %v1370, %v733
      %v1390 = vadd.s32 %v1370, %v734
      %v1391 = vadd.s32 %v1370, %v735
      %v1392 = vadd.s32 %v1370, %v736
      %v1393 = vadd.s32 %v1370, %v737
      %v1394 = vadd.s32 %v1370, %v738
      %v1395 = vadd.s32 %v1370, %v739
      %v1396 = vadd.s32 %v1370, %v740
      %v1397 = vadd.s32 %v1370, %v741
      %v1398 = vadd.s32 %v1370, %v742
      %v1399 = vadd.s32 %v1370, %v743
      %v1400 = vadd.s32 %v1370, %v744
      %v1401 = vadd.s32 %v1370, %v745
      %v1402 = vadd.s32 %v1370, %v746
      %vm1403 = vcmp.lt.s32.totalorder %v1371, 2048
      %vm1404 = vcmp.lt.s32.totalorder %v1372, 2048
      %vm1405 = vcmp.lt.s32.totalorder %v1373, 2048
      %vm1406 = vcmp.lt.s32.totalorder %v1374, 2048
      %vm1407 = vcmp.lt.s32.totalorder %v1375, 2048
      %vm1408 = vcmp.lt.s32.totalorder %v1376, 2048
      %vm1409 = vcmp.lt.s32.totalorder %v1377, 2048
      %vm1410 = vcmp.lt.s32.totalorder %v1378, 2048
      %vm1411 = vcmp.lt.s32.totalorder %v1379, 2048
      %vm1412 = vcmp.lt.s32.totalorder %v1380, 2048
      %vm1413 = vcmp.lt.s32.totalorder %v1381, 2048
      %vm1414 = vcmp.lt.s32.totalorder %v1382, 2048
      %vm1415 = vcmp.lt.s32.totalorder %v1383, 2048
      %vm1416 = vcmp.lt.s32.totalorder %v1384, 2048
      %vm1417 = vcmp.lt.s32.totalorder %v1385, 2048
      %vm1418 = vcmp.lt.s32.totalorder %v1386, 2048
      %vm1419 = vcmp.lt.s32.totalorder %v1387, 2048
      %vm1420 = vcmp.lt.s32.totalorder %v1388, 2048
      %vm1421 = vcmp.lt.s32.totalorder %v1389, 2048
      %vm1422 = vcmp.lt.s32.totalorder %v1390, 2048
      %vm1423 = vcmp.lt.s32.totalorder %v1391, 2048
      %vm1424 = vcmp.lt.s32.totalorder %v1392, 2048
      %vm1425 = vcmp.lt.s32.totalorder %v1393, 2048
      %vm1426 = vcmp.lt.s32.totalorder %v1394, 2048
      %vm1427 = vcmp.lt.s32.totalorder %v1395, 2048
      %vm1428 = vcmp.lt.s32.totalorder %v1396, 2048
      %vm1429 = vcmp.lt.s32.totalorder %v1397, 2048
      %vm1430 = vcmp.lt.s32.totalorder %v1398, 2048
      %vm1431 = vcmp.lt.s32.totalorder %v1399, 2048
      %vm1432 = vcmp.lt.s32.totalorder %v1400, 2048
      %vm1433 = vcmp.lt.s32.totalorder %v1401, 2048
      %vm1434 = vcmp.lt.s32.totalorder %v1402, 2048
      %v1435 = vsel %vm1403, %v1337, 0
      %v1436 = vsel %vm1404, %v1338, 0
      %v1437 = vsel %vm1405, %v1339, 0
      %v1438 = vsel %vm1406, %v1340, 0
      %v1439 = vsel %vm1407, %v1341, 0
      %v1440 = vsel %vm1408, %v1342, 0
      %v1441 = vsel %vm1409, %v1343, 0
      %v1442 = vsel %vm1410, %v1344, 0
      %v1443 = vsel %vm1411, %v1345, 0
      %v1444 = vsel %vm1412, %v1346, 0
      %v1445 = vsel %vm1413, %v1347, 0
      %v1446 = vsel %vm1414, %v1348, 0
      %v1447 = vsel %vm1415, %v1349, 0
      %v1448 = vsel %vm1416, %v1350, 0
      %v1449 = vsel %vm1417, %v1351, 0
      %v1450 = vsel %vm1418, %v1352, 0
      %v1451 = vsel %vm1419, %v1353, 0
      %v1452 = vsel %vm1420, %v1354, 0
      %v1453 = vsel %vm1421, %v1355, 0
      %v1454 = vsel %vm1422, %v1356, 0
      %v1455 = vsel %vm1423, %v1357, 0
      %v1456 = vsel %vm1424, %v1358, 0
      %v1457 = vsel %vm1425, %v1359, 0
      %v1458 = vsel %vm1426, %v1360, 0
      %v1459 = vsel %vm1427, %v1361, 0
      %v1460 = vsel %vm1428, %v1362, 0
      %v1461 = vsel %vm1429, %v1363, 0
      %v1462 = vsel %vm1430, %v1364, 0
      %v1463 = vsel %vm1431, %v1365, 0
      %v1464 = vsel %vm1432, %v1366, 0
      %v1465 = vsel %vm1433, %v1367, 0
      %v1466 = vsel %vm1434, %v1368, 0
      %vm1467 = vcmask 7168
      %1468 = vst.msk [vmem:[%s145] sm:$0xff] %vm1467, %v1435
      %1469 = vst.msk [vmem:[%s145 + $0x8] sm:$0xff] %vm1467, %v1436
      %1470 = vst.msk [vmem:[%s145 + $0x10] sm:$0xff] %vm1467, %v1437
      %1471 = vst.msk [vmem:[%s145 + $0x18] sm:$0xff] %vm1467, %v1438
      %1472 = vst.msk [vmem:[%s145 + $0x20] sm:$0xff] %vm1467, %v1439
      %1473 = vst.msk [vmem:[%s145 + $0x28] sm:$0xff] %vm1467, %v1440
      %1474 = vst.msk [vmem:[%s145 + $0x30] sm:$0xff] %vm1467, %v1441
      %1475 = vst.msk [vmem:[%s145 + $0x38] sm:$0xff] %vm1467, %v1442
      %1476 = vst.msk [vmem:[%s145 + $0x40] sm:$0xff] %vm1467, %v1443
      %1477 = vst.msk [vmem:[%s145 + $0x48] sm:$0xff] %vm1467, %v1444
      %1478 = vst.msk [vmem:[%s145 + $0x50] sm:$0xff] %vm1467, %v1445
      %1479 = vst.msk [vmem:[%s145 + $0x58] sm:$0xff] %vm1467, %v1446
      %1480 = vst.msk [vmem:[%s145 + $0x60] sm:$0xff] %vm1467, %v1447
      %1481 = vst.msk [vmem:[%s145 + $0x68] sm:$0xff] %vm1467, %v1448
      %1482 = vst.msk [vmem:[%s145 + $0x70] sm:$0xff] %vm1467, %v1449
      %1483 = vst.msk [vmem:[%s145 + $0x78] sm:$0xff] %vm1467, %v1450
      %1484 = vst.msk [vmem:[%s145 + $0x80] sm:$0xff] %vm1467, %v1451
      %1485 = vst.msk [vmem:[%s145 + $0x88] sm:$0xff] %vm1467, %v1452
      %1486 = vst.msk [vmem:[%s145 + $0x90] sm:$0xff] %vm1467, %v1453
      %1487 = vst.msk [vmem:[%s145 + $0x98] sm:$0xff] %vm1467, %v1454
      %1488 = vst.msk [vmem:[%s145 + $0xa0] sm:$0xff] %vm1467, %v1455
      %1489 = vst.msk [vmem:[%s145 + $0xa8] sm:$0xff] %vm1467, %v1456
      %1490 = vst.msk [vmem:[%s145 + $0xb0] sm:$0xff] %vm1467, %v1457
      %1491 = vst.msk [vmem:[%s145 + $0xb8] sm:$0xff] %vm1467, %v1458
      %1492 = vst.msk [vmem:[%s145 + $0xc0] sm:$0xff] %vm1467, %v1459
      %1493 = vst.msk [vmem:[%s145 + $0xc8] sm:$0xff] %vm1467, %v1460
      %1494 = vst.msk [vmem:[%s145 + $0xd0] sm:$0xff] %vm1467, %v1461
      %1495 = vst.msk [vmem:[%s145 + $0xd8] sm:$0xff] %vm1467, %v1462
      %1496 = vst.msk [vmem:[%s145 + $0xe0] sm:$0xff] %vm1467, %v1463
      %1497 = vst.msk [vmem:[%s145 + $0xe8] sm:$0xff] %vm1467, %v1464
      %1498 = vst.msk [vmem:[%s145 + $0xf0] sm:$0xff] %vm1467, %v1465
      %1499 = vst.msk [vmem:[%s145 + $0xf8] sm:$0xff] %vm1467, %v1466
      %s1500 = smul.u32 32, %s13
      %p1501 = scmp.lt.s32.totalorder %s1500, 255
      %s1502 = scalar_select %p1501, %s1500, 255
      %s1503 = smul.addr %s1502, 8
      %s1504 = scalar_lea.vmem %s2, %s1503
      // Predicated region
      $region36: #{tpu_custom_call.1} parent=27 // pred_check
        %p1505 = pneg %p78
      $region37: #{tpu_custom_call.1} parent=27 // pred_check_branch
        %1507 = sbr.rel (%p1505) target = $region39
      $region38: #{tpu_custom_call.1} parent=27 // pred_region
        %s1508 = smul.u32 32, %s13
      $region39: #{tpu_custom_call.1} parent=27 // pred_fallthru
        _
    $region28: #{tpu_custom_call.1} parent=5 // pred_fallthru
      _
    %p1509 = scmp.le.s32.totalorder 2, %s8
    // Predicated region
    $region40: #{tpu_custom_call.1} parent=5 // pred_check
      %p1510 = pneg %p1509
    $region41: #{tpu_custom_call.1} parent=5 // pred_check_branch
      %1512 = sbr.rel (%p1510) target = $region43
    $region42: #{tpu_custom_call.1} parent=5 // pred_region
      %s1513 = ssub.s32 %s8, 2
      // Predicated region
      $region44: #{tpu_custom_call.1} parent=42 // pred_check
        %p1514 = pneg %p84
      $region45: #{tpu_custom_call.1} parent=42 // pred_check_branch
        %1516 = sbr.rel (%p1514) target = $region47
      $region46: #{tpu_custom_call.1} parent=42 // pred_region
        %s1517 = smul.u32 32, %s14
        %p1518 = scmp.lt.s32.totalorder %s1517, 255
        %s1519 = scalar_select %p1518, %s1517, 255
        %s1520 = smul.addr %s1519, 8
        %s1521 = scalar_lea.vmem %s2, %s1520
      $region47: #{tpu_custom_call.1} parent=42 // pred_fallthru
        _
    $region43: #{tpu_custom_call.1} parent=5 // pred_fallthru
      _
  $region6: #{tpu_custom_call.1} parent=0 // loop_footer
    %s12 = sadd.s32 1, %s8
  $region7: #{tpu_custom_call.1} parent=0 // loop_footer_branch
    %7 = sbr.rel target = $region3
  $region8: #{tpu_custom_call.1} parent=0 // loop_exit
    _

</llo_original>
